<compile_context>
chip_gen: v7x
topology: tpu7x:2x2x1
jax: 0.10.0
libtpu: 0.0.40
codegen_flags: <defaults>
</compile_context>

<pallas_src>
import functools

import jax
import jax.numpy as jnp
import numpy as np
from jax.experimental import pallas as pl
from jax.experimental.pallas import tpu as pltpu


def _round_up(x, m):
    return (x + m - 1) // m * m


def _rag_infonce_kernel(lab_ref, emb_ref, edges_ref, out_ref,
                        sums_acc, means_ref, iota_ref, exp_acc,
                        *, inv_tau, n_pix):
    """Grid = (phase, pixel_tile).  Layout: pixels / superpixels on lanes.

      lab_ref   : (1, P_TILE)         int32  (label, -1 for padding)
      emb_ref   : (C+1, P_TILE)       bf16   (channels + a ones row)
      edges_ref : (2, E_pad)          int32  (-1 padded)
      out_ref   : (1, 1)              f32    SMEM scalar loss
      sums_acc  : (C+1, N_sp_pad)     f32    VMEM  [sums | counts] accumulator
      means_ref : (C,   N_sp_pad)     bf16   VMEM  superpixel means
      iota_ref  : (N_sp_pad, P_TILE)  int32  VMEM  hoisted superpixel-id iota
      exp_acc   : (1, P_TILE)         f32    VMEM  per-lane running sum exp(s)
    """
    phase = pl.program_id(0)
    tile = pl.program_id(1)
    n_tiles = pl.num_programs(1)

    n_ch = means_ref.shape[0]
    n_sp = means_ref.shape[1]
    cdtype = means_ref.dtype

    @pl.when((phase == 0) & (tile == 0))
    def _init():
        # Hoisted iota: generated once, reloaded from VMEM every step so only
        # the compare + convert of the one-hot stays on the VALU.
        iota_ref[...] = jax.lax.broadcasted_iota(jnp.int32, iota_ref.shape, 0)
        sums_acc[...] = jnp.zeros_like(sums_acc)
        exp_acc[...] = jnp.zeros_like(exp_acc)

    labels = lab_ref[...]                                              # (1, P_TILE)
    # One-hot built in-kernel; pixels stay on the 128-lane axis.
    # NOTE: labels are assumed to lie in [0, num_superpixels); out-of-range
    # labels silently match nothing / a padded superpixel (same as reference).
    onehot = (iota_ref[...] == labels).astype(cdtype)                  # (N_sp, P_TILE)

    @pl.when(phase == 0)
    def _segment_sums():
        emb_aug = emb_ref[...]                                         # (C+1, P_TILE)
        # [sums | counts] += emb_aug @ onehot.T   -> (C+1, N_sp), lane-dense out
        sums_acc[...] += jax.lax.dot_general(
            emb_aug, onehot, (((1,), (1,)), ((), ())),
            preferred_element_type=jnp.float32)

        @pl.when(tile == n_tiles - 1)
        def _finalize_means():
            counts = sums_acc[n_ch:n_ch + 1, :]                        # (1, N_sp)
            means_ref[...] = (sums_acc[:n_ch, :]
                              / jnp.maximum(counts, 1.0)).astype(cdtype)

    @pl.when(phase == 1)
    def _intra_and_loss():
        emb = emb_ref[:n_ch, :].astype(jnp.float32)                    # (C, P_TILE)
        gathered = jnp.dot(means_ref[...], onehot,
                           preferred_element_type=jnp.float32)         # (C, P_TILE)
        per_pix = jnp.sum(gathered * emb, axis=0, keepdims=True)       # (1, P_TILE)
        valid = (labels >= 0).astype(jnp.float32)                      # pad pixels -> 0
        # TODO(synk): reference has no max-subtraction; keep un-stabilized exp.
        s = (1.0 + per_pix) * inv_tau
        exp_acc[...] += jnp.exp(s) * valid                             # pure VPU adds

        @pl.when(tile == n_tiles - 1)
        def _finalize_loss():
            # Intra mean term, analytically from the segment sums/counts:
            #   sum_p s_p = (sum_sp count_sp + sum_sp mean_sp . sum_sp) / tau
            means_f32 = means_ref[...].astype(jnp.float32)
            sum_s = (jnp.sum(sums_acc[n_ch:n_ch + 1, :])
                     + jnp.sum(means_f32 * sums_acc[:n_ch, :])) * inv_tau

            # RAG-edge inter terms (tiny, built once here).
            e_pad = edges_ref.shape[1]
            e0 = edges_ref[0:1, :]                                     # (1, E_pad)
            e1 = edges_ref[1:2, :]
            ed_iota = jax.lax.broadcasted_iota(jnp.int32, (n_sp, e_pad), 0)
            a0 = (ed_iota == e0).astype(cdtype)                        # (N_sp, E_pad)
            a1 = (ed_iota == e1).astype(cdtype)
            means = means_ref[...]
            f0 = jnp.dot(means, a0, preferred_element_type=jnp.float32)  # (C, E_pad)
            f1 = jnp.dot(means, a1, preferred_element_type=jnp.float32)
            inter = (1.0 + jnp.sum(f0 * f1, axis=0, keepdims=True)) * inv_tau
            e_valid = (e0 >= 0).astype(jnp.float32)                    # pad edges -> 0

            denom = jnp.sum(exp_acc[...]) + jnp.sum(jnp.exp(inter) * e_valid)
            out_ref[0, 0] = jnp.log(denom) - sum_s / n_pix


_MIN_TILE = 256
_VMEM_BUDGET = 36 * 1024 * 1024          # working-set budget (fits v7x headroom)


def _vmem_estimate(p_tile, n_sp_pad, n_ch, e_pad, emb_bytes):
    """Rough per-step VMEM working set: double-buffered inputs + scratch +
    the big transient (one-hot / compare) intermediates."""
    in_bufs = 2 * (p_tile * 4                       # labels
                   + (n_ch + 1) * p_tile * emb_bytes  # emb | ones
                   + 2 * e_pad * 4)                 # edges
    scratch = (n_sp_pad * p_tile * 4                # hoisted iota
               + (n_ch + 1) * n_sp_pad * 4          # sums | counts
               + n_ch * n_sp_pad * emb_bytes        # means
               + p_tile * 4)                        # exp accumulator
    temps = (n_sp_pad * p_tile * (emb_bytes + 4)    # one-hot + compare temp
             + 3 * (n_ch + 1) * p_tile * 4)         # gathered / per-pixel temps
    return in_bufs + scratch + temps


def rag_infonce_loss(embeddings, sp_seg, edges, tau, *,
                     num_superpixels=None, pixel_tile=4096,
                     compute_dtype=jnp.bfloat16):
    """embeddings: (1, C, H, W) f32, sp_seg: (1, 1, H, W) int, edges: (2, E) int.

    Pass `num_superpixels` statically to avoid a device->host sync and
    shape-dependent recompiles.  `pixel_tile` is caller-tunable; it is
    auto-shrunk to fit the VMEM budget.
    """
    B, C, H, W = embeddings.shape
    assert B == 1, "the reference module's boolean-mask gather requires B == 1"
    P = B * H * W

    if num_superpixels is None:
        # Fallback only: forces a device->host sync every call.
        num_superpixels = int(jnp.max(sp_seg)) + 1

    n_sp_pad = _round_up(max(int(num_superpixels), 1), 128)
    emb_bytes = jnp.dtype(compute_dtype).itemsize

    # edges: (2, E_pad) int32, lane-dense padding, padded edges get -1
    n_edges = int(edges.shape[1])
    e_pad = _round_up(max(n_edges, 1), 128)

    # Pick the biggest pixel tile that fits the VMEM budget.
    p_tile = min(_round_up(int(pixel_tile), 128), _round_up(P, 128))
    p_tile = max(p_tile, 128)
    while (p_tile > _MIN_TILE and
           _vmem_estimate(p_tile, n_sp_pad, C, e_pad, emb_bytes) > _VMEM_BUDGET):
        p_tile = max(_round_up(p_tile // 2, 128), _MIN_TILE)
    p_pad = _round_up(P, p_tile)
    n_tiles = p_pad // p_tile

    # labels: (1, P_pad) int32, padded pixels get -1 (masked out in-kernel)
    labels = sp_seg.reshape(1, P).astype(jnp.int32)
    labels = jnp.pad(labels, ((0, 0), (0, p_pad - P)), constant_values=-1)

    # embeddings channels-major + a ones row (counts come out of one matmul)
    emb_cp = embeddings.reshape(C, P)
    emb_aug = jnp.concatenate([emb_cp, jnp.ones((1, P), emb_cp.dtype)], axis=0)
    emb_aug = jnp.pad(emb_aug.astype(compute_dtype), ((0, 0), (0, p_pad - P)))

    edges2 = jnp.pad(jnp.asarray(edges, jnp.int32),
                     ((0, 0), (0, e_pad - n_edges)), constant_values=-1)

    kernel = functools.partial(_rag_infonce_kernel,
                               inv_tau=1.0 / float(tau), n_pix=float(P))

    vmem_est = _vmem_estimate(p_tile, n_sp_pad, C, e_pad, emb_bytes)
    # Explicit limit: v5e default scoped limit (16 MiB) would reject big tiles;
    # keep the cap under v7x's 64 MiB physical VMEM.
    vmem_limit = int(min(max(int(vmem_est * 1.25), 32 * 1024 * 1024),
                         48 * 1024 * 1024))

    grid_spec = pltpu.PrefetchScalarGridSpec(
        num_scalar_prefetch=0,
        grid=(2, n_tiles),                                   # (phase, pixel tile)
        in_specs=[
            pl.BlockSpec((1, p_tile), lambda ph, t: (0, t)),       # labels
            pl.BlockSpec((C + 1, p_tile), lambda ph, t: (0, t)),   # emb | ones
            pl.BlockSpec((2, e_pad), lambda ph, t: (0, 0)),        # edges
        ],
        out_specs=pl.BlockSpec((1, 1), lambda ph, t: (0, 0),
                               memory_space=pltpu.MemorySpace.SMEM),
        scratch_shapes=[
            pltpu.VMEM((C + 1, n_sp_pad), jnp.float32),   # [sums | counts]
            pltpu.VMEM((C, n_sp_pad), compute_dtype),     # sp_means
            pltpu.VMEM((n_sp_pad, p_tile), jnp.int32),    # hoisted sp-id iota
            pltpu.VMEM((1, p_tile), jnp.float32),         # per-lane sum exp(s)
        ],
    )

    # TODO(synk): on v7x, shard the pixel-tile axis across the 2 TensorCores
    # (two pixel-sharded pallas_calls + tiny combine) for up to ~2x.
    out = pl.pallas_call(
        kernel,
        grid_spec=grid_spec,
        out_shape=jax.ShapeDtypeStruct((1, 1), jnp.float32),
        compiler_params=pltpu.CompilerParams(
            dimension_semantics=("arbitrary", "arbitrary"),
            vmem_limit_bytes=vmem_limit),
    )(labels, emb_aug, edges2)
    return out[0, 0]


def rag_infonce_reference(embeddings, sp_seg, edges, tau):
    """Pure NumPy reference mirroring the PyTorch forward (for validation)."""
    emb = np.asarray(embeddings, dtype=np.float64)
    B, C, H, W = emb.shape
    P = B * H * W
    labels = np.asarray(sp_seg).reshape(P)
    n_sp = int(labels.max()) + 1
    E = emb.reshape(C, P)
    mask = (labels[None, :] == np.arange(n_sp)[:, None]).astype(np.float64)
    counts = mask.sum(1)
    sp_means = (mask @ E.T) / counts[:, None]
    s = (1.0 + (sp_means[labels] * E.T).sum(1)) / tau
    e0, e1 = np.asarray(edges)
    t = (1.0 + (sp_means[e0] * sp_means[e1]).sum(1)) / tau
    denom = np.exp(s).sum() + np.exp(t).sum()
    return np.log(denom) - s.mean()


if __name__ == "__main__":
    key = jax.random.PRNGKey(0)
    B, C, H, W = 1, 8, 16, 16
    TAU = 0.5
    N_SP = 8

    k1, _ = jax.random.split(key)
    embeddings = (0.1 * jax.random.normal(k1, (B, C, H, W))).astype(jnp.float32)

    # superpixel segmentation: 8 rectangular superpixels (labels 0..7, all present)
    rows = jnp.arange(H) // (H // 4)          # 0..3
    cols = jnp.arange(W) // (W // 2)          # 0..1
    sp = (rows[:, None] * 2 + cols[None, :]).astype(jnp.int32)   # (H, W)
    sp_seg = sp[None, None]                                      # (1, 1, H, W)

    # RAG edges between adjacent superpixels, shape (2, E)
    edges = jnp.asarray(
        np.array([[0, 1], [0, 2], [1, 3], [2, 3], [2, 4], [3, 5],
                  [4, 5], [4, 6], [5, 7], [6, 7], [0, 3], [1, 2]],
                 dtype=np.int32).T)

    loss = rag_infonce_loss(embeddings, sp_seg, edges, TAU,
                            num_superpixels=N_SP)
    jax.block_until_ready(loss)

    ref = rag_infonce_reference(embeddings, sp_seg, edges, TAU)
    np.testing.assert_allclose(np.asarray(loss), ref, rtol=2e-2, atol=2e-2)

    print("KERNEL_OK")
</pallas_src>

<mosaic_0001>
module attributes {stable_mosaic.version = 11 : i64} {
  func.func @_rag_infonce_kernel(%arg0: i32, %arg1: i32, %arg2: memref<1x256xi32, #tpu.memory_space<vmem>>, %arg3: memref<9x256xbf16, #tpu.memory_space<vmem>>, %arg4: memref<2x128xi32, #tpu.memory_space<vmem>>, %arg5: memref<1x1xf32, #tpu.memory_space<smem>>, %arg6: memref<9x128xf32, #tpu.memory_space<vmem>>, %arg7: memref<8x128xbf16, #tpu.memory_space<vmem>>, %arg8: memref<128x256xi32, #tpu.memory_space<vmem>>, %arg9: memref<1x256xf32, #tpu.memory_space<vmem>>) attributes {dimension_semantics = [#tpu.dimension_semantics<arbitrary>, #tpu.dimension_semantics<arbitrary>], iteration_bounds = array<i64: 2, 1>, scalar_prefetch = 0 : i64, scratch_operands = 4 : i64, tpu.core_type = #tpu.core_type<tc>, window_params = [{transform_indices = @transform_0, window_bounds = array<i64: 1, 256>}, {transform_indices = @transform_1, window_bounds = array<i64: 9, 256>}, {pipeline_mode = #tpu.pipeline_mode<synchronous>, transform_indices = @transform_2, window_bounds = array<i64: 2, 128>}, {transform_indices = @transform_3, window_bounds = array<i64: 1, 1>}]} {
    %c0_i32 = arith.constant 0 : i32
    %0 = arith.cmpi eq, %arg0, %c0_i32 : i32
    %c0_i32_0 = arith.constant 0 : i32
    %1 = arith.cmpi eq, %arg1, %c0_i32_0 : i32
    %2 = arith.andi %0, %1 : i1
    %3 = arith.extui %2 : i1 to i32
    %c0_i32_1 = arith.constant 0 : i32
    %4 = arith.cmpi ne, %3, %c0_i32_1 : i32
    scf.if %4 {
      %18 = tpu.iota {dimensions = array<i32: 0>} : vector<128x256xi32>
      %c0_8 = arith.constant 0 : index
      %c0_9 = arith.constant 0 : index
      %19 = vector.load %arg8[%c0_8, %c0_9] : memref<128x256xi32, #tpu.memory_space<vmem>>, vector<128x256xi32>
      tpu.vector_store %arg8[%c0_8, %c0_9], %18 {strides = array<i32>} : memref<128x256xi32, #tpu.memory_space<vmem>>, vector<128x256xi32>,
      %cst = arith.constant 0.000000e+00 : f32
      %20 = vector.broadcast %cst : f32 to vector<9x128xf32>
      %c0_10 = arith.constant 0 : index
      %c0_11 = arith.constant 0 : index
      %21 = vector.load %arg6[%c0_10, %c0_11] : memref<9x128xf32, #tpu.memory_space<vmem>>, vector<9x128xf32>
      tpu.vector_store %arg6[%c0_10, %c0_11], %20 {strides = array<i32>} : memref<9x128xf32, #tpu.memory_space<vmem>>, vector<9x128xf32>,
      %cst_12 = arith.constant 0.000000e+00 : f32
      %22 = vector.broadcast %cst_12 : f32 to vector<1x256xf32>
      %c0_13 = arith.constant 0 : index
      %c0_14 = arith.constant 0 : index
      %23 = vector.load %arg9[%c0_13, %c0_14] : memref<1x256xf32, #tpu.memory_space<vmem>>, vector<1x256xf32>
      tpu.vector_store %arg9[%c0_13, %c0_14], %22 {strides = array<i32>} : memref<1x256xf32, #tpu.memory_space<vmem>>, vector<1x256xf32>,
    } else {
    }
    %c0 = arith.constant 0 : index
    %c0_2 = arith.constant 0 : index
    %5 = vector.load %arg2[%c0, %c0_2] : memref<1x256xi32, #tpu.memory_space<vmem>>, vector<1x256xi32>
    %c0_3 = arith.constant 0 : index
    %c0_4 = arith.constant 0 : index
    %6 = vector.load %arg8[%c0_3, %c0_4] : memref<128x256xi32, #tpu.memory_space<vmem>>, vector<128x256xi32>
    %7 = vector.broadcast %5 : vector<1x256xi32> to vector<128x256xi32>
    %8 = arith.cmpi eq, %6, %7 : vector<128x256xi32>
    %9 = arith.extui %8 : vector<128x256xi1> to vector<128x256xi32>
    %10 = arith.sitofp %9 : vector<128x256xi32> to vector<128x256xf32>
    %11 = arith.truncf %10 : vector<128x256xf32> to vector<128x256xbf16>
    %c0_i32_5 = arith.constant 0 : i32
    %12 = arith.cmpi eq, %arg0, %c0_i32_5 : i32
    %13 = arith.extui %12 : i1 to i32
    %c0_i32_6 = arith.constant 0 : i32
    %14 = arith.cmpi ne, %13, %c0_i32_6 : i32
    scf.if %14 {
      %c0_8 = arith.constant 0 : index
      %c0_9 = arith.constant 0 : index
      %18 = vector.load %arg3[%c0_8, %c0_9] : memref<9x256xbf16, #tpu.memory_space<vmem>>, vector<9x256xbf16>
      %c0_10 = arith.constant 0 : index
      %c0_11 = arith.constant 0 : index
      %19 = vector.load %arg6[%c0_10, %c0_11] : memref<9x128xf32, #tpu.memory_space<vmem>>, vector<9x128xf32>
      %cst = arith.constant dense<0.000000e+00> : vector<9x128xf32>
      %20 = tpu.matmul %18, %11, %cst {dimension_numbers = #tpu.dot_dimension_numbers<[1], [1], [0], [0], [0, 0, 1, 0], [], []>} : vector<9x256xbf16>, vector<128x256xbf16>, vector<9x128xf32> -> vector<9x128xf32>
      %21 = arith.addf %19, %20 : vector<9x128xf32>
      %c0_12 = arith.constant 0 : index
      %c0_13 = arith.constant 0 : index
      %22 = vector.load %arg6[%c0_12, %c0_13] : memref<9x128xf32, #tpu.memory_space<vmem>>, vector<9x128xf32>
      tpu.vector_store %arg6[%c0_12, %c0_13], %21 {strides = array<i32>} : memref<9x128xf32, #tpu.memory_space<vmem>>, vector<9x128xf32>,
      %c0_i32_14 = arith.constant 0 : i32
      %23 = arith.cmpi eq, %arg1, %c0_i32_14 : i32
      %24 = arith.extui %23 : i1 to i32
      %c0_i32_15 = arith.constant 0 : i32
      %25 = arith.cmpi ne, %24, %c0_i32_15 : i32
      scf.if %25 {
        %c8 = arith.constant 8 : index
        %c0_16 = arith.constant 0 : index
        %26 = vector.load %arg6[%c8, %c0_16] : memref<9x128xf32, #tpu.memory_space<vmem>>, vector<1x128xf32>
        %c0_17 = arith.constant 0 : index
        %c0_18 = arith.constant 0 : index
        %27 = vector.load %arg6[%c0_17, %c0_18] : memref<9x128xf32, #tpu.memory_space<vmem>>, vector<8x128xf32>
        %cst_19 = arith.constant 1.000000e+00 : f32
        %28 = vector.broadcast %cst_19 : f32 to vector<1x128xf32>
        %29 = arith.maximumf %26, %28 : vector<1x128xf32>
        %30 = vector.broadcast %29 : vector<1x128xf32> to vector<8x128xf32>
        %31 = arith.divf %27, %30 : vector<8x128xf32>
        %32 = arith.truncf %31 : vector<8x128xf32> to vector<8x128xbf16>
        %c0_20 = arith.constant 0 : index
        %c0_21 = arith.constant 0 : index
        %33 = vector.load %arg7[%c0_20, %c0_21] : memref<8x128xbf16, #tpu.memory_space<vmem>>, vector<8x128xbf16>
        tpu.vector_store %arg7[%c0_20, %c0_21], %32 {strides = array<i32>} : memref<8x128xbf16, #tpu.memory_space<vmem>>, vector<8x128xbf16>,
      } else {
      }
    } else {
    }
    %c1_i32 = arith.constant 1 : i32
    %15 = arith.cmpi eq, %arg0, %c1_i32 : i32
    %16 = arith.extui %15 : i1 to i32
    %c0_i32_7 = arith.constant 0 : i32
    %17 = arith.cmpi ne, %16, %c0_i32_7 : i32
    scf.if %17 {
      %c0_8 = arith.constant 0 : index
      %c0_9 = arith.constant 0 : index
      %18 = vector.load %arg3[%c0_8, %c0_9] : memref<9x256xbf16, #tpu.memory_space<vmem>>, vector<8x256xbf16>
      %19 = arith.extf %18 : vector<8x256xbf16> to vector<8x256xf32>
      %c0_10 = arith.constant 0 : index
      %c0_11 = arith.constant 0 : index
      %20 = vector.load %arg7[%c0_10, %c0_11] : memref<8x128xbf16, #tpu.memory_space<vmem>>, vector<8x128xbf16>
      %cst = arith.constant dense<0.000000e+00> : vector<8x256xf32>
      %21 = tpu.matmul %20, %11, %cst {dimension_numbers = #tpu.dot_dimension_numbers<[1], [0], [0], [1], [0, 0, 1, 1], [], []>} : vector<8x128xbf16>, vector<128x256xbf16>, vector<8x256xf32> -> vector<8x256xf32>
      %22 = arith.mulf %21, %19 : vector<8x256xf32>
      %cst_12 = arith.constant dense<0.000000e+00> : vector<256xf32>
      %23 = vector.multi_reduction <add>, %22, %cst_12 [0] : vector<8x256xf32> to vector<256xf32>
      %24 = vector.shape_cast %23 : vector<256xf32> to vector<1x256xf32>
      %c0_i32_13 = arith.constant 0 : i32
      %25 = vector.broadcast %c0_i32_13 : i32 to vector<1x256xi32>
      %26 = arith.cmpi sge, %5, %25 : vector<1x256xi32>
      %27 = arith.extui %26 : vector<1x256xi1> to vector<1x256xi32>
      %28 = arith.sitofp %27 : vector<1x256xi32> to vector<1x256xf32>
      %cst_14 = arith.constant 1.000000e+00 : f32
      %29 = vector.broadcast %cst_14 : f32 to vector<1x256xf32>
      %30 = arith.addf %29, %24 : vector<1x256xf32>
      %cst_15 = arith.constant 2.000000e+00 : f32
      %31 = vector.broadcast %cst_15 : f32 to vector<1x256xf32>
      %32 = arith.mulf %30, %31 : vector<1x256xf32>
      %c0_16 = arith.constant 0 : index
      %c0_17 = arith.constant 0 : index
      %33 = vector.load %arg9[%c0_16, %c0_17] : memref<1x256xf32, #tpu.memory_space<vmem>>, vector<1x256xf32>
      %34 = math.exp %32 : vector<1x256xf32>
      %35 = arith.mulf %34, %28 : vector<1x256xf32>
      %36 = arith.addf %33, %35 : vector<1x256xf32>
      %c0_18 = arith.constant 0 : index
      %c0_19 = arith.constant 0 : index
      %37 = vector.load %arg9[%c0_18, %c0_19] : memref<1x256xf32, #tpu.memory_space<vmem>>, vector<1x256xf32>
      tpu.vector_store %arg9[%c0_18, %c0_19], %36 {strides = array<i32>} : memref<1x256xf32, #tpu.memory_space<vmem>>, vector<1x256xf32>,
      %c0_i32_20 = arith.constant 0 : i32
      %38 = arith.cmpi eq, %arg1, %c0_i32_20 : i32
      %39 = arith.extui %38 : i1 to i32
      %c0_i32_21 = arith.constant 0 : i32
      %40 = arith.cmpi ne, %39, %c0_i32_21 : i32
      scf.if %40 {
        %c0_22 = arith.constant 0 : index
        %c0_23 = arith.constant 0 : index
        %41 = vector.load %arg7[%c0_22, %c0_23] : memref<8x128xbf16, #tpu.memory_space<vmem>>, vector<8x128xbf16>
        %42 = arith.extf %41 : vector<8x128xbf16> to vector<8x128xf32>
        %c8 = arith.constant 8 : index
        %c0_24 = arith.constant 0 : index
        %43 = vector.load %arg6[%c8, %c0_24] : memref<9x128xf32, #tpu.memory_space<vmem>>, vector<1x128xf32>
        %44 = vector.shape_cast %43 : vector<1x128xf32> to vector<1x1x128xf32>
        %cst_25 = arith.constant dense<0.000000e+00> : vector<1xf32>
        %45 = vector.multi_reduction <add>, %44, %cst_25 [1, 2] : vector<1x1x128xf32> to vector<1xf32>
        %46 = vector.shape_cast %45 : vector<1xf32> to vector<1x1x1xf32>
        %47 = vector.extract %46[0, 0, 0] : f32 from vector<1x1x1xf32>
        %c0_26 = arith.constant 0 : index
        %c0_27 = arith.constant 0 : index
        %48 = vector.load %arg6[%c0_26, %c0_27] : memref<9x128xf32, #tpu.memory_space<vmem>>, vector<8x128xf32>
        %49 = arith.mulf %42, %48 : vector<8x128xf32>
        %50 = vector.shape_cast %49 : vector<8x128xf32> to vector<1x8x128xf32>
        %cst_28 = arith.constant dense<0.000000e+00> : vector<1xf32>
        %51 = vector.multi_reduction <add>, %50, %cst_28 [1, 2] : vector<1x8x128xf32> to vector<1xf32>
        %52 = vector.shape_cast %51 : vector<1xf32> to vector<1x1x1xf32>
        %53 = vector.extract %52[0, 0, 0] : f32 from vector<1x1x1xf32>
        %54 = arith.addf %47, %53 : f32
        %cst_29 = arith.constant 2.000000e+00 : f32
        %55 = arith.mulf %54, %cst_29 : f32
        %c0_30 = arith.constant 0 : index
        %c0_31 = arith.constant 0 : index
        %56 = vector.load %arg4[%c0_30, %c0_31] : memref<2x128xi32, #tpu.memory_space<vmem>>, vector<1x128xi32>
        %c1 = arith.constant 1 : index
        %c0_32 = arith.constant 0 : index
        %57 = vector.load %arg4[%c1, %c0_32] : memref<2x128xi32, #tpu.memory_space<vmem>>, vector<1x128xi32>
        %58 = tpu.iota {dimensions = array<i32: 0>} : vector<128x128xi32>
        %59 = vector.broadcast %56 : vector<1x128xi32> to vector<128x128xi32>
        %60 = arith.cmpi eq, %58, %59 : vector<128x128xi32>
        %61 = arith.extui %60 : vector<128x128xi1> to vector<128x128xi32>
        %62 = arith.sitofp %61 : vector<128x128xi32> to vector<128x128xf32>
        %63 = arith.truncf %62 : vector<128x128xf32> to vector<128x128xbf16>
        %64 = vector.broadcast %57 : vector<1x128xi32> to vector<128x128xi32>
        %65 = arith.cmpi eq, %58, %64 : vector<128x128xi32>
        %66 = arith.extui %65 : vector<128x128xi1> to vector<128x128xi32>
        %67 = arith.sitofp %66 : vector<128x128xi32> to vector<128x128xf32>
        %68 = arith.truncf %67 : vector<128x128xf32> to vector<128x128xbf16>
        %c0_33 = arith.constant 0 : index
        %c0_34 = arith.constant 0 : index
        %69 = vector.load %arg7[%c0_33, %c0_34] : memref<8x128xbf16, #tpu.memory_space<vmem>>, vector<8x128xbf16>
        %cst_35 = arith.constant dense<0.000000e+00> : vector<8x128xf32>
        %70 = tpu.matmul %69, %63, %cst_35 {dimension_numbers = #tpu.dot_dimension_numbers<[1], [0], [0], [1], [0, 0, 1, 1], [], []>} : vector<8x128xbf16>, vector<128x128xbf16>, vector<8x128xf32> -> vector<8x128xf32>
        %cst_36 = arith.constant dense<0.000000e+00> : vector<8x128xf32>
        %71 = tpu.matmul %69, %68, %cst_36 {dimension_numbers = #tpu.dot_dimension_numbers<[1], [0], [0], [1], [0, 0, 1, 1], [], []>} : vector<8x128xbf16>, vector<128x128xbf16>, vector<8x128xf32> -> vector<8x128xf32>
        %72 = arith.mulf %70, %71 : vector<8x128xf32>
        %cst_37 = arith.constant dense<0.000000e+00> : vector<128xf32>
        %73 = vector.multi_reduction <add>, %72, %cst_37 [0] : vector<8x128xf32> to vector<128xf32>
        %74 = vector.shape_cast %73 : vector<128xf32> to vector<1x128xf32>
        %cst_38 = arith.constant 1.000000e+00 : f32
        %75 = vector.broadcast %cst_38 : f32 to vector<1x128xf32>
        %76 = arith.addf %75, %74 : vector<1x128xf32>
        %cst_39 = arith.constant 2.000000e+00 : f32
        %77 = vector.broadcast %cst_39 : f32 to vector<1x128xf32>
        %78 = arith.mulf %76, %77 : vector<1x128xf32>
        %c0_i32_40 = arith.constant 0 : i32
        %79 = vector.broadcast %c0_i32_40 : i32 to vector<1x128xi32>
        %80 = arith.cmpi sge, %56, %79 : vector<1x128xi32>
        %81 = arith.extui %80 : vector<1x128xi1> to vector<1x128xi32>
        %82 = arith.sitofp %81 : vector<1x128xi32> to vector<1x128xf32>
        %c0_41 = arith.constant 0 : index
        %c0_42 = arith.constant 0 : index
        %83 = vector.load %arg9[%c0_41, %c0_42] : memref<1x256xf32, #tpu.memory_space<vmem>>, vector<1x256xf32>
        %84 = vector.shape_cast %83 : vector<1x256xf32> to vector<1x1x256xf32>
        %cst_43 = arith.constant dense<0.000000e+00> : vector<1xf32>
        %85 = vector.multi_reduction <add>, %84, %cst_43 [1, 2] : vector<1x1x256xf32> to vector<1xf32>
        %86 = vector.shape_cast %85 : vector<1xf32> to vector<1x1x1xf32>
        %87 = vector.extract %86[0, 0, 0] : f32 from vector<1x1x1xf32>
        %88 = math.exp %78 : vector<1x128xf32>
        %89 = arith.mulf %88, %82 : vector<1x128xf32>
        %90 = vector.shape_cast %89 : vector<1x128xf32> to vector<1x1x128xf32>
        %cst_44 = arith.constant dense<0.000000e+00> : vector<1xf32>
        %91 = vector.multi_reduction <add>, %90, %cst_44 [1, 2] : vector<1x1x128xf32> to vector<1xf32>
        %92 = vector.shape_cast %91 : vector<1xf32> to vector<1x1x1xf32>
        %93 = vector.extract %92[0, 0, 0] : f32 from vector<1x1x1xf32>
        %94 = arith.addf %87, %93 : f32
        %95 = math.log %94 : f32
        %cst_45 = arith.constant 2.560000e+02 : f32
        %96 = arith.divf %55, %cst_45 : f32
        %97 = arith.subf %95, %96 : f32
        %c0_46 = arith.constant 0 : index
        %c0_47 = arith.constant 0 : index
        %98 = memref.load %arg5[%c0_46, %c0_47] : memref<1x1xf32, #tpu.memory_space<smem>>
        memref.store %97, %arg5[%c0_46, %c0_47] : memref<1x1xf32, #tpu.memory_space<smem>>
      } else {
      }
    } else {
    }
    return
  }
  func.func @transform_0(%arg0: i32, %arg1: i32) -> (i32, i32) {
    %c0_i32 = arith.constant 0 : i32
    %c0_i32_0 = arith.constant 0 : i32
    return %c0_i32, %arg1 : i32, i32
  }
  func.func @transform_1(%arg0: i32, %arg1: i32) -> (i32, i32) {
    %c0_i32 = arith.constant 0 : i32
    %c0_i32_0 = arith.constant 0 : i32
    return %c0_i32, %arg1 : i32, i32
  }
  func.func @transform_2(%arg0: i32, %arg1: i32) -> (i32, i32) {
    %c0_i32 = arith.constant 0 : i32
    %c0_i32_0 = arith.constant 0 : i32
    %c0_i32_1 = arith.constant 0 : i32
    return %c0_i32, %c0_i32_0 : i32, i32
  }
  func.func @transform_3(%arg0: i32, %arg1: i32) -> (i32, i32) {
    %c0_i32 = arith.constant 0 : i32
    %c0_i32_0 = arith.constant 0 : i32
    %c0_i32_1 = arith.constant 0 : i32
    return %c0_i32, %c0_i32_0 : i32, i32
  }
}

</mosaic_0001>

<llo_original>
// kernel: tpu_custom_call.1
$region0: #{tpu_custom_call.1}
  #allocation0 [shape = 'u32[]', space=smem, size = 0x4, offset = 0x4, fixed_abs, tag = 'smem constant byte address 0x4 - core index']
  #allocation1 [shape = 'u32[144,128]{1,0:T(1,128)}', space=vmem, size = 0x12000, scoped, tag = 'internal scratch']
  #allocation2 [shape = 'f32[9,128]{1,0:T(8,128)}', space=vmem, size = 0x2000, scoped, tag = 'scratch operand']
  #allocation3 [shape = 'bf16[8,128]{1,0:T(8,128)(2,1)}', space=vmem, size = 0x800, scoped, tag = 'scratch operand']
  #allocation4 [shape = 's32[128,256]{1,0:T(8,128)}', space=vmem, size = 0x20000, scoped, tag = 'scratch operand']
  #allocation5 [shape = 'f32[1,256]{1,0:T(1,128)}', space=vmem, size = 0x400, scoped, tag = 'scratch operand']
  %s0 = inlined_call_operand.hbm [shape: s32[1,256], index: 0, kind: input, shape index: {}]
  %s1 = inlined_call_operand.hbm [shape: bf16[9,256], index: 1, kind: input, shape index: {}]
  %s2 = inlined_call_operand.vmem [shape: s32[2,128], index: 2, kind: input, shape index: {}]
  %s3 = inlined_call_operand.hbm [shape: f32[1,1], index: 3, kind: output, shape index: {}]
  %s4 = sld [smem:[#allocation0]]
  $region73: #{tpu_custom_call.1} parent=0
    _
  %s6 = ssub.s32 1, %s4
  %s7 = scalar_select 0, %s6, %s4
  $region1: #{tpu_custom_call.1} parent=0
    #allocation6 [shape = 'u8[1024]{0}', space=vmem, size = 0x400, scoped, tag = 'input window, operand 0, single buffered']
    #allocation7 [shape = 's32[2]{0}', space=sflag, size = 0x8, scoped, tag = 'scoped memory for tpu_custom_call.1']
    #allocation8 [shape = 's32[2]{0}', space=sflag, size = 0x8, scoped, tag = 'scoped memory for tpu_custom_call.1']
    #allocation9 [shape = 'u8[8192]{0}', space=vmem, size = 0x2000, scoped, tag = 'input window, operand 1, single buffered']
    #allocation10 [shape = 's32[1]{0}', space=sflag, size = 0x4, scoped, tag = 'scoped memory for tpu_custom_call.1']
    #allocation11 [shape = 'u8[512]{0}', space=smem, size = 0x200, scoped, tag = 'output window, operand 0, single buffered']
    %8 = vsyncpa [#allocation7], 0
    %9 = vsyncpa [#allocation10], 0
    %10 = vsyncpa [#allocation8], 0
    loop: start=0, step=1, limit=4
    $region2: #{tpu_custom_call.1} parent=1 // loop_pre_header
      _
    $region3: #{tpu_custom_call.1} parent=1 // loop_header
      %s12 = sphi 0, %s16
      %p13 = scmp.ge.s32.totalorder %s12, 4
      %s19 = sphi 0, %s31
      %s20 = sphi 0, %s27
      %s21 = sphi 0, %s19
      %s22 = sphi 0, %s20
      %s23 = sphi 0, %s21
      %s24 = sphi 0, %s22
      %s34 = sphi 0, %s36
      %s37 = sphi 0, %s34
      %s38 = sphi 0, %s37
      %s54 = sphi 0, %s38
      %s60 = sphi 0, %s62
      %s63 = sphi 0, %s60
      %s64 = sphi 0, %s63
      %s80 = sphi 0, %s64
      %s84 = sphi 0, %s84
      %s86 = sphi 0, %s84
      %s87 = sphi 0, %s86
      %s101 = sphi 0, %s87
      %s105 = sphi 0, %s105
      %s107 = sphi 0, %s105
      %s108 = sphi 0, %s107
      %s122 = sphi 0, %s108
    $region4: #{tpu_custom_call.1} parent=1 // loop_header_branch
      %15 = sbr.rel (%p13) target = $region8
    $region5: #{tpu_custom_call.1} parent=1 // loop_body
      %s17 = ssub.s32 %s12, 1
      %s18 = ssub.s32 %s12, 2
      %s25 = sadd.s32 1, %s20
      %p26 = scmp.ge.s32.totalorder %s25, 1
      %s27 = scalar_select %p26, 0, %s25
      %s28 = sadd.s32 1, %s19
      %s29 = scalar_select %p26, %s28, %s19
      %p30 = scmp.ge.s32.totalorder %s29, 2
      %s31 = scalar_select %p30, 0, %s29
      %s32 = ssub.s32 %s20, %s27
      %p33 = scmp.eq.s32.totalorder %s32, 0
      %s35 = sadd.s32 %s34, 1
      %s36 = scalar_select %p33, %s34, %s35
      %p39 = pneg %p33
      %p40 = scmp.eq.s32.totalorder %s12, 1
      %p41 = por %p39, %p40
      %p42 = scmp.ne.s32.totalorder %s34, %s37
      %p43 = scmp.eq.s32.totalorder %s12, 0
      %p44 = por %p42, %p43
      %p45 = scmp.ne.s32.totalorder %s34, %s37
      %p46 = scmp.eq.s32.totalorder %s17, 1
      %p47 = por %p45, %p46
      %p48 = scmp.ne.s32.totalorder %s37, %s38
      %p49 = scmp.eq.s32.totalorder %s17, 0
      %p50 = por %p48, %p49
      %p51 = scmp.ne.s32.totalorder %s37, %s38
      %p52 = scmp.eq.s32.totalorder %s18, 1
      %p53 = por %p51, %p52
      %p55 = scmp.ne.s32.totalorder %s38, %s54
      %p56 = scmp.eq.s32.totalorder %s18, 0
      %p57 = por %p55, %p56
      %s58 = ssub.s32 %s20, %s27
      %p59 = scmp.eq.s32.totalorder %s58, 0
      %s61 = sadd.s32 %s60, 1
      %s62 = scalar_select %p59, %s60, %s61
      %p65 = pneg %p59
      %p66 = scmp.eq.s32.totalorder %s12, 1
      %p67 = por %p65, %p66
      %p68 = scmp.ne.s32.totalorder %s60, %s63
      %p69 = scmp.eq.s32.totalorder %s12, 0
      %p70 = por %p68, %p69
      %p71 = scmp.ne.s32.totalorder %s60, %s63
      %p72 = scmp.eq.s32.totalorder %s17, 1
      %p73 = por %p71, %p72
      %p74 = scmp.ne.s32.totalorder %s63, %s64
      %p75 = scmp.eq.s32.totalorder %s17, 0
      %p76 = por %p74, %p75
      %p77 = scmp.ne.s32.totalorder %s63, %s64
      %p78 = scmp.eq.s32.totalorder %s18, 1
      %p79 = por %p77, %p78
      %p81 = scmp.ne.s32.totalorder %s64, %s80
      %p82 = scmp.eq.s32.totalorder %s18, 0
      %p83 = por %p81, %p82
      %s85 = sadd.s32 %s84, 1
      %p88 = scmp.eq.s32.totalorder %s12, 1
      %p89 = scmp.ne.s32.totalorder %s84, %s86
      %p90 = scmp.eq.s32.totalorder %s12, 0
      %p91 = por %p89, %p90
      %p92 = scmp.ne.s32.totalorder %s84, %s86
      %p93 = scmp.eq.s32.totalorder %s17, 1
      %p94 = por %p92, %p93
      %p95 = scmp.ne.s32.totalorder %s86, %s87
      %p96 = scmp.eq.s32.totalorder %s17, 0
      %p97 = por %p95, %p96
      %p98 = scmp.ne.s32.totalorder %s86, %s87
      %p99 = scmp.eq.s32.totalorder %s18, 1
      %p100 = por %p98, %p99
      %p102 = scmp.ne.s32.totalorder %s87, %s101
      %p103 = scmp.eq.s32.totalorder %s18, 0
      %p104 = por %p102, %p103
      %s106 = sadd.s32 %s105, 1
      %p109 = scmp.eq.s32.totalorder %s12, 1
      %p110 = scmp.ne.s32.totalorder %s105, %s107
      %p111 = scmp.eq.s32.totalorder %s12, 0
      %p112 = por %p110, %p111
      %p113 = scmp.ne.s32.totalorder %s105, %s107
      %p114 = scmp.eq.s32.totalorder %s17, 1
      %p115 = por %p113, %p114
      %p116 = scmp.ne.s32.totalorder %s107, %s108
      %p117 = scmp.eq.s32.totalorder %s17, 0
      %p118 = por %p116, %p117
      %p119 = scmp.ne.s32.totalorder %s107, %s108
      %p120 = scmp.eq.s32.totalorder %s18, 1
      %p121 = por %p119, %p120
      %p123 = scmp.ne.s32.totalorder %s108, %s122
      %p124 = scmp.eq.s32.totalorder %s18, 0
      %p125 = por %p123, %p124
      %p126 = scmp.le.s32.totalorder 1, %s12
      %p127 = scmp.lt.s32.totalorder %s12, 3
      %p128 = pnand %p126, %p127
      %p129 = pneg %p128
      // Predicated region
      $region9: #{tpu_custom_call.1} parent=5 // pred_check
        _
      $region10: #{tpu_custom_call.1} parent=5 // pred_check_branch
        %131 = sbr.rel (%p128) target = $region12
      $region11: #{tpu_custom_call.1} parent=5 // pred_region
        %s132 = ssub.s32 %s12, 1
        // Predicated region
        $region13: #{tpu_custom_call.1} parent=11 // pred_check
          %p133 = pneg %p50
        $region14: #{tpu_custom_call.1} parent=11 // pred_check_branch
          %135 = sbr.rel (%p133) target = $region16
        $region15: #{tpu_custom_call.1} parent=11 // pred_region
          %s136 = smul.u32 2, %s22
          %s138 = ssub.s32 32, 32
          %139 = vsyncadd [#allocation7], %s138
          %s140 = smul.addr %s136, 16
          %s141 = scalar_lea.hbm %s0, %s140
          %s143 = sshll.u32 [#allocation6], 4
          %s144 = int_to_ptr.vmem [resolvable:$true] %s143
          %146 = dma.hbm_to_vmem [thread:$0]  %s141, 32, %s144, [#allocation7]
        $region16: #{tpu_custom_call.1} parent=11 // pred_fallthru
          _
        // Predicated region
        $region17: #{tpu_custom_call.1} parent=11 // pred_check
          %p147 = pneg %p76
        $region18: #{tpu_custom_call.1} parent=11 // pred_check_branch
          %149 = sbr.rel (%p147) target = $region20
        $region19: #{tpu_custom_call.1} parent=11 // pred_region
          %s150 = smul.u32 2, %s22
          %s152 = ssub.s32 256, 256
          %153 = vsyncadd [#allocation10], %s152
          %s154 = smul.addr %s150, 64
          %s155 = scalar_lea.hbm %s1, %s154
          %s156 = sshll.u32 [#allocation9], 4
          %s157 = int_to_ptr.vmem [resolvable:$true] %s156
          %162 = dma.hbm_to_vmem [thread:$0]  %s155, 256, %s157, [#allocation10], 128, 128, 8
        $region20: #{tpu_custom_call.1} parent=11 // pred_fallthru
          _
        // Predicated region
        $region21: #{tpu_custom_call.1} parent=11 // pred_check
          %p163 = pneg %p97
        $region22: #{tpu_custom_call.1} parent=11 // pred_check_branch
          %165 = sbr.rel (%p163) target = $region24
        $region23: #{tpu_custom_call.1} parent=11 // pred_region
          _
        $region24: #{tpu_custom_call.1} parent=11 // pred_fallthru
          _
      $region12: #{tpu_custom_call.1} parent=5 // pred_fallthru
        _
      %p166 = scmp.lt.s32.totalorder %s12, 2
      // Predicated region
      $region25: #{tpu_custom_call.1} parent=5 // pred_check
        %p167 = pneg %p166
      $region26: #{tpu_custom_call.1} parent=5 // pred_check_branch
        %169 = sbr.rel (%p167) target = $region28
      $region27: #{tpu_custom_call.1} parent=5 // pred_region
        _
      $region28: #{tpu_custom_call.1} parent=5 // pred_fallthru
        _
      %p170 = scmp.le.s32.totalorder 1, %s12
      %p171 = scmp.lt.s32.totalorder %s12, 3
      %p172 = pnand %p170, %p171
      %p173 = pneg %p172
      // Predicated region
      $region29: #{tpu_custom_call.1} parent=5 // pred_check
        _
      $region30: #{tpu_custom_call.1} parent=5 // pred_check_branch
        %175 = sbr.rel (%p172) target = $region32
      $region31: #{tpu_custom_call.1} parent=5 // pred_region
        %s176 = ssub.s32 %s12, 1
        // Predicated region
        $region33: #{tpu_custom_call.1} parent=31 // pred_check
          %p177 = pneg %p50
        $region34: #{tpu_custom_call.1} parent=31 // pred_check_branch
          %179 = sbr.rel (%p177) target = $region36
        $region35: #{tpu_custom_call.1} parent=31 // pred_region
          %180 = dma.done [#allocation7], 32
        $region36: #{tpu_custom_call.1} parent=31 // pred_fallthru
          _
        // Predicated region
        $region37: #{tpu_custom_call.1} parent=31 // pred_check
          %p181 = pneg %p76
        $region38: #{tpu_custom_call.1} parent=31 // pred_check_branch
          %183 = sbr.rel (%p181) target = $region40
        $region39: #{tpu_custom_call.1} parent=31 // pred_region
          %184 = dma.done [#allocation10], 256
        $region40: #{tpu_custom_call.1} parent=31 // pred_fallthru
          _
        %p185 = pneg %p50
        %p186 = pneg %p47
        %p187 = pneg %p76
        %p188 = pneg %p73
        %p189 = pneg %p97
        %p190 = pneg %p94
        %p191 = pneg %p118
        %p192 = pneg %p115
        %s193 = smul.u32 2, %s22
        %s194 = smul.u32 2, %s22
        %p196 = scmp.eq.s32.totalorder %s21, 0
        %p197 = scmp.eq.s32.totalorder %s22, 0
        %p198 = pnand %p196, %p197
        %p199 = pneg %p198
        // Predicated region
        $region41: #{tpu_custom_call.1} parent=31 // pred_check
          _
        $region42: #{tpu_custom_call.1} parent=31 // pred_check_branch
          %201 = sbr.rel (%p198) target = $region44
        $region43: #{tpu_custom_call.1} parent=31 // pred_region
          %v202 = vlaneseq
          %v203 = vshrl.u32 %v202, 7
          %v204 = vadd.s32 %v203, 8
          %v205 = vadd.s32 %v203, 16
          %v206 = vadd.s32 %v203, 24
          %v207 = vadd.s32 %v203, 32
          %v208 = vadd.s32 %v203, 40
          %v209 = vadd.s32 %v203, 48
          %v210 = vadd.s32 %v203, 56
          %v211 = vadd.s32 %v203, 64
          %v212 = vadd.s32 %v203, 72
          %v213 = vadd.s32 %v203, 80
          %v214 = vadd.s32 %v203, 88
          %v215 = vadd.s32 %v203, 96
          %v216 = vadd.s32 %v203, 104
          %v217 = vadd.s32 %v203, 112
          %v218 = vadd.s32 %v203, 120
          %219 = vst [vmem:[#allocation4] sm:$0xff] %v203
          %220 = vst [vmem:[#allocation4 + $0x8] sm:$0xff] %v203
          %221 = vst [vmem:[#allocation4 + $0x10] sm:$0xff] %v204
          %222 = vst [vmem:[#allocation4 + $0x18] sm:$0xff] %v204
          %223 = vst [vmem:[#allocation4 + $0x20] sm:$0xff] %v205
          %224 = vst [vmem:[#allocation4 + $0x28] sm:$0xff] %v205
          %225 = vst [vmem:[#allocation4 + $0x30] sm:$0xff] %v206
          %226 = vst [vmem:[#allocation4 + $0x38] sm:$0xff] %v206
          %227 = vst [vmem:[#allocation4 + $0x40] sm:$0xff] %v207
          %228 = vst [vmem:[#allocation4 + $0x48] sm:$0xff] %v207
          %229 = vst [vmem:[#allocation4 + $0x50] sm:$0xff] %v208
          %230 = vst [vmem:[#allocation4 + $0x58] sm:$0xff] %v208
          %231 = vst [vmem:[#allocation4 + $0x60] sm:$0xff] %v209
          %232 = vst [vmem:[#allocation4 + $0x68] sm:$0xff] %v209
          %233 = vst [vmem:[#allocation4 + $0x70] sm:$0xff] %v210
          %234 = vst [vmem:[#allocation4 + $0x78] sm:$0xff] %v210
          %235 = vst [vmem:[#allocation4 + $0x80] sm:$0xff] %v211
          %236 = vst [vmem:[#allocation4 + $0x88] sm:$0xff] %v211
          %237 = vst [vmem:[#allocation4 + $0x90] sm:$0xff] %v212
          %238 = vst [vmem:[#allocation4 + $0x98] sm:$0xff] %v212
          %239 = vst [vmem:[#allocation4 + $0xa0] sm:$0xff] %v213
          %240 = vst [vmem:[#allocation4 + $0xa8] sm:$0xff] %v213
          %241 = vst [vmem:[#allocation4 + $0xb0] sm:$0xff] %v214
          %242 = vst [vmem:[#allocation4 + $0xb8] sm:$0xff] %v214
          %243 = vst [vmem:[#allocation4 + $0xc0] sm:$0xff] %v215
          %244 = vst [vmem:[#allocation4 + $0xc8] sm:$0xff] %v215
          %245 = vst [vmem:[#allocation4 + $0xd0] sm:$0xff] %v216
          %246 = vst [vmem:[#allocation4 + $0xd8] sm:$0xff] %v216
          %247 = vst [vmem:[#allocation4 + $0xe0] sm:$0xff] %v217
          %248 = vst [vmem:[#allocation4 + $0xe8] sm:$0xff] %v217
          %249 = vst [vmem:[#allocation4 + $0xf0] sm:$0xff] %v218
          %250 = vst [vmem:[#allocation4 + $0xf8] sm:$0xff] %v218
          %251 = vst [vmem:[#allocation2] sm:$0xff] 0.0
          %252 = vst [vmem:[#allocation2 + $0x8] sm:$0x1] 0.0
          %v253 = vlaneseq
          %vm254 = vcmp.ge.s32.totalorder %v253, 0
          %vm255 = vcmp.lt.s32.totalorder %v253, 256
          %vm256 = vmand %vm254, %vm255
          %257 = vst.msk [vmem:[#allocation5] sm:$0x3] %vm256, 0.0
        $region44: #{tpu_custom_call.1} parent=31 // pred_fallthru
          _
        %v258 = vld [vmem:[#allocation6] sm:$0x3]
        %v259 = vld [vmem:[#allocation4] sm:$0xff]
        %v260 = vld [vmem:[#allocation4 + $0x8] sm:$0xff]
        %v261 = vld [vmem:[#allocation4 + $0x10] sm:$0xff]
        %v262 = vld [vmem:[#allocation4 + $0x18] sm:$0xff]
        %v263 = vld [vmem:[#allocation4 + $0x20] sm:$0xff]
        %v264 = vld [vmem:[#allocation4 + $0x28] sm:$0xff]
        %v265 = vld [vmem:[#allocation4 + $0x30] sm:$0xff]
        %v266 = vld [vmem:[#allocation4 + $0x38] sm:$0xff]
        %v267 = vld [vmem:[#allocation4 + $0x40] sm:$0xff]
        %v268 = vld [vmem:[#allocation4 + $0x48] sm:$0xff]
        %v269 = vld [vmem:[#allocation4 + $0x50] sm:$0xff]
        %v270 = vld [vmem:[#allocation4 + $0x58] sm:$0xff]
        %v271 = vld [vmem:[#allocation4 + $0x60] sm:$0xff]
        %v272 = vld [vmem:[#allocation4 + $0x68] sm:$0xff]
        %v273 = vld [vmem:[#allocation4 + $0x70] sm:$0xff]
        %v274 = vld [vmem:[#allocation4 + $0x78] sm:$0xff]
        %v275 = vld [vmem:[#allocation4 + $0x80] sm:$0xff]
        %v276 = vld [vmem:[#allocation4 + $0x88] sm:$0xff]
        %v277 = vld [vmem:[#allocation4 + $0x90] sm:$0xff]
        %v278 = vld [vmem:[#allocation4 + $0x98] sm:$0xff]
        %v279 = vld [vmem:[#allocation4 + $0xa0] sm:$0xff]
        %v280 = vld [vmem:[#allocation4 + $0xa8] sm:$0xff]
        %v281 = vld [vmem:[#allocation4 + $0xb0] sm:$0xff]
        %v282 = vld [vmem:[#allocation4 + $0xb8] sm:$0xff]
        %v283 = vld [vmem:[#allocation4 + $0xc0] sm:$0xff]
        %v284 = vld [vmem:[#allocation4 + $0xc8] sm:$0xff]
        %v285 = vld [vmem:[#allocation4 + $0xd0] sm:$0xff]
        %v286 = vld [vmem:[#allocation4 + $0xd8] sm:$0xff]
        %v287 = vld [vmem:[#allocation4 + $0xe0] sm:$0xff]
        %v288 = vld [vmem:[#allocation4 + $0xe8] sm:$0xff]
        %v289 = vld [vmem:[#allocation4 + $0xf0] sm:$0xff]
        %v290 = vld [vmem:[#allocation4 + $0xf8] sm:$0xff]
        %v291 = vlaneseq
        %v292 = vshrl.u32 %v291, 7
        %v293 = vsub.s32 0, %v292
        %v294 = vrot.slane %v258, %v293
        %v295 = vlaneseq
        %v296 = vshrl.u32 %v295, 7
        %v297 = vsub.s32 1, %v296
        %v298 = vrot.slane %v258, %v297
        %vm299 = vcmp.eq.s32.totalorder %v259, %v294
        %vm300 = vcmp.eq.s32.totalorder %v260, %v298
        %vm301 = vcmp.eq.s32.totalorder %v261, %v294
        %vm302 = vcmp.eq.s32.totalorder %v262, %v298
        %vm303 = vcmp.eq.s32.totalorder %v263, %v294
        %vm304 = vcmp.eq.s32.totalorder %v264, %v298
        %vm305 = vcmp.eq.s32.totalorder %v265, %v294
        %vm306 = vcmp.eq.s32.totalorder %v266, %v298
        %vm307 = vcmp.eq.s32.totalorder %v267, %v294
        %vm308 = vcmp.eq.s32.totalorder %v268, %v298
        %vm309 = vcmp.eq.s32.totalorder %v269, %v294
        %vm310 = vcmp.eq.s32.totalorder %v270, %v298
        %vm311 = vcmp.eq.s32.totalorder %v271, %v294
        %vm312 = vcmp.eq.s32.totalorder %v272, %v298
        %vm313 = vcmp.eq.s32.totalorder %v273, %v294
        %vm314 = vcmp.eq.s32.totalorder %v274, %v298
        %vm315 = vcmp.eq.s32.totalorder %v275, %v294
        %vm316 = vcmp.eq.s32.totalorder %v276, %v298
        %vm317 = vcmp.eq.s32.totalorder %v277, %v294
        %vm318 = vcmp.eq.s32.totalorder %v278, %v298
        %vm319 = vcmp.eq.s32.totalorder %v279, %v294
        %vm320 = vcmp.eq.s32.totalorder %v280, %v298
        %vm321 = vcmp.eq.s32.totalorder %v281, %v294
        %vm322 = vcmp.eq.s32.totalorder %v282, %v298
        %vm323 = vcmp.eq.s32.totalorder %v283, %v294
        %vm324 = vcmp.eq.s32.totalorder %v284, %v298
        %vm325 = vcmp.eq.s32.totalorder %v285, %v294
        %vm326 = vcmp.eq.s32.totalorder %v286, %v298
        %vm327 = vcmp.eq.s32.totalorder %v287, %v294
        %vm328 = vcmp.eq.s32.totalorder %v288, %v298
        %vm329 = vcmp.eq.s32.totalorder %v289, %v294
        %vm330 = vcmp.eq.s32.totalorder %v290, %v298
        %v331 = vsel %vm299, 1, 0
        %v332 = vsel %vm300, 1, 0
        %v333 = vsel %vm301, 1, 0
        %v334 = vsel %vm302, 1, 0
        %v335 = vsel %vm303, 1, 0
        %v336 = vsel %vm304, 1, 0
        %v337 = vsel %vm305, 1, 0
        %v338 = vsel %vm306, 1, 0
        %v339 = vsel %vm307, 1, 0
        %v340 = vsel %vm308, 1, 0
        %v341 = vsel %vm309, 1, 0
        %v342 = vsel %vm310, 1, 0
        %v343 = vsel %vm311, 1, 0
        %v344 = vsel %vm312, 1, 0
        %v345 = vsel %vm313, 1, 0
        %v346 = vsel %vm314, 1, 0
        %v347 = vsel %vm315, 1, 0
        %v348 = vsel %vm316, 1, 0
        %v349 = vsel %vm317, 1, 0
        %v350 = vsel %vm318, 1, 0
        %v351 = vsel %vm319, 1, 0
        %v352 = vsel %vm320, 1, 0
        %v353 = vsel %vm321, 1, 0
        %v354 = vsel %vm322, 1, 0
        %v355 = vsel %vm323, 1, 0
        %v356 = vsel %vm324, 1, 0
        %v357 = vsel %vm325, 1, 0
        %v358 = vsel %vm326, 1, 0
        %v359 = vsel %vm327, 1, 0
        %v360 = vsel %vm328, 1, 0
        %v361 = vsel %vm329, 1, 0
        %v362 = vsel %vm330, 1, 0
        %v363 = vcvt.s32.f32 %v331
        %v364 = vcvt.s32.f32 %v332
        %v365 = vcvt.s32.f32 %v333
        %v366 = vcvt.s32.f32 %v334
        %v367 = vcvt.s32.f32 %v335
        %v368 = vcvt.s32.f32 %v336
        %v369 = vcvt.s32.f32 %v337
        %v370 = vcvt.s32.f32 %v338
        %v371 = vcvt.s32.f32 %v339
        %v372 = vcvt.s32.f32 %v340
        %v373 = vcvt.s32.f32 %v341
        %v374 = vcvt.s32.f32 %v342
        %v375 = vcvt.s32.f32 %v343
        %v376 = vcvt.s32.f32 %v344
        %v377 = vcvt.s32.f32 %v345
        %v378 = vcvt.s32.f32 %v346
        %v379 = vcvt.s32.f32 %v347
        %v380 = vcvt.s32.f32 %v348
        %v381 = vcvt.s32.f32 %v349
        %v382 = vcvt.s32.f32 %v350
        %v383 = vcvt.s32.f32 %v351
        %v384 = vcvt.s32.f32 %v352
        %v385 = vcvt.s32.f32 %v353
        %v386 = vcvt.s32.f32 %v354
        %v387 = vcvt.s32.f32 %v355
        %v388 = vcvt.s32.f32 %v356
        %v389 = vcvt.s32.f32 %v357
        %v390 = vcvt.s32.f32 %v358
        %v391 = vcvt.s32.f32 %v359
        %v392 = vcvt.s32.f32 %v360
        %v393 = vcvt.s32.f32 %v361
        %v394 = vcvt.s32.f32 %v362
        %v395 = vpack.c.bf16 %v365, %v363
        %v396 = vpack.c.bf16 %v366, %v364
        %v397 = vpack.c.bf16 %v369, %v367
        %v398 = vpack.c.bf16 %v370, %v368
        %v399 = vpack.c.bf16 %v373, %v371
        %v400 = vpack.c.bf16 %v374, %v372
        %v401 = vpack.c.bf16 %v377, %v375
        %v402 = vpack.c.bf16 %v378, %v376
        %v403 = vpack.c.bf16 %v381, %v379
        %v404 = vpack.c.bf16 %v382, %v380
        %v405 = vpack.c.bf16 %v385, %v383
        %v406 = vpack.c.bf16 %v386, %v384
        %v407 = vpack.c.bf16 %v389, %v387
        %v408 = vpack.c.bf16 %v390, %v388
        %v409 = vpack.c.bf16 %v393, %v391
        %v410 = vpack.c.bf16 %v394, %v392
        // Predicated region
        $region45: #{tpu_custom_call.1} parent=31 // pred_check
          %p411 = pneg %p196
        $region46: #{tpu_custom_call.1} parent=31 // pred_check_branch
          %413 = sbr.rel (%p411) target = $region48
        $region47: #{tpu_custom_call.1} parent=31 // pred_region
          %v414 = vld [vmem:[#allocation9] sm:$0xff]
          %v415 = vld [vmem:[#allocation9 + $0x8] sm:$0x11]
          %v416 = vld [vmem:[#allocation2] sm:$0xff]
          %v417 = vld [vmem:[#allocation2 + $0x8] sm:$0x1]
          %v420 = vunpack.c.l.b16 %v414
          %v421 = vunpack.c.h.b16 %v414
          %v422 = vunpack.c.l.b16 %v415
          %v423 = vunpack.c.h.b16 %v415
          %v424 = vpack.c.b16 %v422, %v420
          %v425 = vpack.c.b16 %v423, %v421
          %428 = vmatprep.subr.bf16.mxu0 %v396
          %429 = vmatpush1.bf16.xpose.msra.mxu0 %v395
          %430 = vmatprep.subr.bf16.mxu0 %v398
          %431 = vmatpush1.bf16.xpose.msra.mxu0 %v397
          %432 = vmatprep.subr.bf16.mxu0 %v400
          %433 = vmatpush1.bf16.xpose.msra.mxu0 %v399
          %434 = vmatprep.subr.bf16.mxu0 %v402
          %435 = vmatpush1.bf16.xpose.msra.mxu0 %v401
          %436 = vmatprep.subr.bf16.mxu0 %v404
          %437 = vmatpush1.bf16.xpose.msra.mxu0 %v403
          %438 = vmatprep.subr.bf16.mxu0 %v406
          %439 = vmatpush1.bf16.xpose.msra.mxu0 %v405
          %440 = vmatprep.subr.bf16.mxu0 %v408
          %441 = vmatpush1.bf16.xpose.msra.mxu0 %v407
          %442 = vmatprep.subr.bf16.mxu0 %v410
          %443 = vmatpush1.bf16.xpose.msra.mxu0 %v409
          %444 = vmatprep.subr.bf16.mxu0 0
          %445 = vmatpush1.bf16.xpose.msra.mxu0 0
          %446 = vmatprep.subr.bf16.mxu0 0
          %447 = vmatpush1.bf16.xpose.msra.mxu0 0
          %448 = vmatprep.subr.bf16.mxu0 0
          %449 = vmatpush1.bf16.xpose.msra.mxu0 0
          %450 = vmatprep.subr.bf16.mxu0 0
          %451 = vmatpush1.bf16.xpose.msra.mxu0 0
          %452 = vmatprep.subr.bf16.mxu0 0
          %453 = vmatpush1.bf16.xpose.msra.mxu0 0
          %454 = vmatprep.subr.bf16.mxu0 0
          %455 = vmatpush1.bf16.xpose.msra.mxu0 0
          %456 = vmatprep.subr.bf16.mxu0 0
          %457 = vmatpush1.bf16.xpose.msra.mxu0 0
          %458 = vmatprep.subr.bf16.mxu0 0
          %459 = vmatpush1.bf16.xpose.msra.mxu0 0
          %460 = vmatprep.mubr.bf16.mxu0 %v425
          %461 = vmatmul.mubr.bf16.gmra.mrb[0].mxu0 %v424
          %v462 = vpop.f32.mrb[0].mxu0
          %v463 = vadd.f32 0.0, %v462
          %v464 = vpop.f32.mrb[0].mxu0
          %v465 = vpop.f32.mrb[0].mxu0
          %v466 = vadd.f32 0.0, %v465
          %v467 = vpop.f32.mrb[0].mxu0
          %468 = vdwg.mxu0
          %v469 = vadd.f32 %v416, %v463
          %v470 = vadd.f32 %v417, %v466
          %471 = vst [vmem:[#allocation2] sm:$0xff] %v469
          %472 = vst [vmem:[#allocation2 + $0x8] sm:$0x1] %v470
          // Predicated region
          $region49: #{tpu_custom_call.1} parent=47 // pred_check
            %p473 = pneg %p197
          $region50: #{tpu_custom_call.1} parent=47 // pred_check_branch
            %475 = sbr.rel (%p473) target = $region52
          $region51: #{tpu_custom_call.1} parent=47 // pred_region
            %v476 = vld [vmem:[#allocation2 + $0x8] sm:$0x1]
            %v477 = vld [vmem:[#allocation2] sm:$0xff]
            %v478 = vmax.f32 %v476, 1.0
            %v479 = vlaneseq
            %v480 = vshrl.u32 %v479, 7
            %v481 = vsub.s32 0, %v480
            %v482 = vrot.slane %v478, %v481
            %v483 = vrcp.pop %v482
            %v484 = vmul.f32 %v477, %v483
            %v485 = vpack.c.bf16 %v484, %v484
            %486 = vst [vmem:[#allocation3] sm:$0xf] %v485
          $region52: #{tpu_custom_call.1} parent=47 // pred_fallthru
            _
        $region48: #{tpu_custom_call.1} parent=31 // pred_fallthru
          _
        %p487 = scmp.eq.s32.totalorder %s21, 1
        // Predicated region
        $region53: #{tpu_custom_call.1} parent=31 // pred_check
          %p488 = pneg %p487
        $region54: #{tpu_custom_call.1} parent=31 // pred_check_branch
          %490 = sbr.rel (%p488) target = $region56
        $region55: #{tpu_custom_call.1} parent=31 // pred_region
          %v491 = vld [vmem:[#allocation9] sm:$0xff]
          %v492 = vunpack.c.l.bf16 %v491
          %v493 = vunpack.c.h.bf16 %v491
          %v494 = vld [vmem:[#allocation3] sm:$0xf]
          %495 = vmatprep.subr.bf16.mxu0 %v396
          %496 = vmatpush1.bf16.msra.mxu0 %v395
          %497 = vmatprep.subr.bf16.mxu0 %v398
          %498 = vmatpush1.bf16.msra.mxu0 %v397
          %499 = vmatprep.subr.bf16.mxu0 %v400
          %500 = vmatpush1.bf16.msra.mxu0 %v399
          %501 = vmatprep.subr.bf16.mxu0 %v402
          %502 = vmatpush1.bf16.msra.mxu0 %v401
          %503 = vmatprep.subr.bf16.mxu0 %v404
          %504 = vmatpush1.bf16.msra.mxu0 %v403
          %505 = vmatprep.subr.bf16.mxu0 %v406
          %506 = vmatpush1.bf16.msra.mxu0 %v405
          %507 = vmatprep.subr.bf16.mxu0 %v408
          %508 = vmatpush1.bf16.msra.mxu0 %v407
          %509 = vmatprep.subr.bf16.mxu0 %v410
          %510 = vmatpush1.bf16.msra.mxu0 %v409
          %511 = vmatprep.subr.bf16.mxu0 0
          %512 = vmatpush1.bf16.msra.mxu0 0
          %513 = vmatprep.subr.bf16.mxu0 0
          %514 = vmatpush1.bf16.msra.mxu0 0
          %515 = vmatprep.subr.bf16.mxu0 0
          %516 = vmatpush1.bf16.msra.mxu0 0
          %517 = vmatprep.subr.bf16.mxu0 0
          %518 = vmatpush1.bf16.msra.mxu0 0
          %519 = vmatprep.subr.bf16.mxu0 0
          %520 = vmatpush1.bf16.msra.mxu0 0
          %521 = vmatprep.subr.bf16.mxu0 0
          %522 = vmatpush1.bf16.msra.mxu0 0
          %523 = vmatprep.subr.bf16.mxu0 0
          %524 = vmatpush1.bf16.msra.mxu0 0
          %525 = vmatprep.subr.bf16.mxu0 0
          %526 = vmatpush1.bf16.msra.mxu0 0
          %527 = vmatprep.mubr.bf16.mxu0 0
          %528 = vmatmul.mubr.bf16.gmra.mrb[0].mxu0 %v494
          %v529 = vpop.f32.mrb[0].mxu0
          %v530 = vadd.f32 0.0, %v529
          %v531 = vpop.f32.mrb[0].mxu0
          %v532 = vadd.f32 0.0, %v531
          %v533 = vpop.f32.mrb[0].mxu0
          %v534 = vpop.f32.mrb[0].mxu0
          %535 = vdwg.mxu0
          %v536 = vmul.f32 %v530, %v492
          %v537 = vmul.f32 %v532, %v493
          %v538 = vrot.slane %v536, 4
          %v539 = vadd.f32 %v536, %v538
          %v540 = vrot.slane %v539, 2
          %v541 = vadd.f32 %v539, %v540
          %v542 = vrot.slane %v541, 1
          %v543 = vadd.f32 %v541, %v542
          %v544 = vrot.slane %v537, 4
          %v545 = vadd.f32 %v537, %v544
          %v546 = vrot.slane %v545, 2
          %v547 = vadd.f32 %v545, %v546
          %v548 = vrot.slane %v547, 1
          %v549 = vadd.f32 %v547, %v548
          %vm550 = vcmp.ge.s32.totalorder %v258, 0
          %v551 = vsel %vm550, 1, 0
          %v552 = vcvt.s32.f32 %v551
          %v553 = vadd.f32 %v543, 1.0
          %v554 = vadd.f32 %v549, 1.0
          %v555 = vmul.f32 %v553, 2.0
          %v556 = vmul.f32 %v554, 2.0
          %v557 = vld [vmem:[#allocation5] sm:$0x3]
          %v558 = vmul.f32 %v555, 1.442695
          %v559 = vpow.pop %v558
          %v560 = vmul.f32 %v556, 1.442695
          %v561 = vpow.pop %v560
          %v563 = vlaneseq
          %v564 = vshrl.u32 %v563, 7
          %v565 = vsub.s32 0, %v564
          %v566 = vrot.slane %v552, %v565
          %v567 = vlaneseq
          %v568 = vshrl.u32 %v567, 7
          %v569 = vsub.s32 1, %v568
          %v570 = vrot.slane %v552, %v569
          %v573 = vmul.f32 %v559, %v566
          %v574 = vmul.f32 %v561, %v570
          %v577 = vcombine.low %v573, %v574
          %v579 = vunpack.c.l.s4 1966171168
          %v580 = vunpack.c.0.s8 %v579
          %v581 = vlaneseq
          %v582 = vshrl.u32 %v581, 7
          %v583 = vsub.s32 %v580, %v582
          %v584 = vrot.slane %v577, %v583
          %v586 = vunpack.c.l.s4 1966171168
          %v587 = vunpack.c.0.s8 %v586
          %v588 = vlaneseq
          %v589 = vshrl.u32 %v588, 7
          %v590 = vsub.s32 %v587, %v589
          %v591 = vrot.slane %v584, %v590
          %v593 = vadd.f32 %v557, %v591
          %v594 = vlaneseq
          %vm595 = vcmp.ge.s32.totalorder %v594, 0
          %vm596 = vcmp.lt.s32.totalorder %v594, 256
          %vm597 = vmand %vm595, %vm596
          %598 = vst.msk [vmem:[#allocation5] sm:$0x3] %vm597, %v593
          // Predicated region
          $region57: #{tpu_custom_call.1} parent=55 // pred_check
            %p599 = pneg %p197
          $region58: #{tpu_custom_call.1} parent=55 // pred_check_branch
            %601 = sbr.rel (%p599) target = $region60
          $region59: #{tpu_custom_call.1} parent=55 // pred_region
            %v602 = vld [vmem:[#allocation3] sm:$0xf]
            %v603 = vunpack.c.l.bf16 %v602
            %v604 = vld [vmem:[#allocation2 + $0x8] sm:$0x1]
            %vm605 = vcmask 1040384
            %v606 = vsel %vm605, %v604, 0.0
            %607 = vadd.xlane.f32.xlu0 %v606
            %v608 = vpop.xlane.xlu0 %607
            %v609 = vrot.slane %v608, 4
            %v610 = vadd.f32 %v608, %v609
            %v611 = vrot.slane %v610, 2
            %v612 = vadd.f32 %v610, %v611
            %v613 = vrot.slane %v612, 1
            %v614 = vadd.f32 %v612, %v613
            %s615 = vtos %v614
            %v616 = vld [vmem:[#allocation2] sm:$0xff]
            %v617 = vmul.f32 %v603, %v616
            %618 = vadd.xlane.f32.xlu0 %v617
            %v619 = vpop.xlane.xlu0 %618
            %v620 = vrot.slane %v619, 4
            %v621 = vadd.f32 %v619, %v620
            %v622 = vrot.slane %v621, 2
            %v623 = vadd.f32 %v621, %v622
            %v624 = vrot.slane %v623, 1
            %v625 = vadd.f32 %v623, %v624
            %s626 = vtos %v625
            %s627 = sadd.f32 %s615, %s626
            %s628 = smul.f32 %s627, 2.0
            %v629 = vld [vmem:[%s2] sm:$0x1]
            %v630 = vld [vmem:[%s2 + $0x1] sm:$0x1]
            %v631 = vlaneseq
            %v632 = vshrl.u32 %v631, 7
            %v633 = vadd.s32 %v632, 8
            %v634 = vadd.s32 %v632, 16
            %v635 = vadd.s32 %v632, 24
            %v636 = vadd.s32 %v632, 32
            %v637 = vadd.s32 %v632, 40
            %v638 = vadd.s32 %v632, 48
            %v639 = vadd.s32 %v632, 56
            %v640 = vadd.s32 %v632, 64
            %v641 = vadd.s32 %v632, 72
            %v642 = vadd.s32 %v632, 80
            %v643 = vadd.s32 %v632, 88
            %v644 = vadd.s32 %v632, 96
            %v645 = vadd.s32 %v632, 104
            %v646 = vadd.s32 %v632, 112
            %v647 = vadd.s32 %v632, 120
            %v648 = vlaneseq
            %v649 = vshrl.u32 %v648, 7
            %v650 = vsub.s32 0, %v649
            %v651 = vrot.slane %v629, %v650
            %vm652 = vcmp.eq.s32.totalorder %v632, %v651
            %vm653 = vcmp.eq.s32.totalorder %v633, %v651
            %vm654 = vcmp.eq.s32.totalorder %v634, %v651
            %vm655 = vcmp.eq.s32.totalorder %v635, %v651
            %vm656 = vcmp.eq.s32.totalorder %v636, %v651
            %vm657 = vcmp.eq.s32.totalorder %v637, %v651
            %vm658 = vcmp.eq.s32.totalorder %v638, %v651
            %vm659 = vcmp.eq.s32.totalorder %v639, %v651
            %vm660 = vcmp.eq.s32.totalorder %v640, %v651
            %vm661 = vcmp.eq.s32.totalorder %v641, %v651
            %vm662 = vcmp.eq.s32.totalorder %v642, %v651
            %vm663 = vcmp.eq.s32.totalorder %v643, %v651
            %vm664 = vcmp.eq.s32.totalorder %v644, %v651
            %vm665 = vcmp.eq.s32.totalorder %v645, %v651
            %vm666 = vcmp.eq.s32.totalorder %v646, %v651
            %vm667 = vcmp.eq.s32.totalorder %v647, %v651
            %v668 = vsel %vm652, 1, 0
            %v669 = vsel %vm653, 1, 0
            %v670 = vsel %vm654, 1, 0
            %v671 = vsel %vm655, 1, 0
            %v672 = vsel %vm656, 1, 0
            %v673 = vsel %vm657, 1, 0
            %v674 = vsel %vm658, 1, 0
            %v675 = vsel %vm659, 1, 0
            %v676 = vsel %vm660, 1, 0
            %v677 = vsel %vm661, 1, 0
            %v678 = vsel %vm662, 1, 0
            %v679 = vsel %vm663, 1, 0
            %v680 = vsel %vm664, 1, 0
            %v681 = vsel %vm665, 1, 0
            %v682 = vsel %vm666, 1, 0
            %v683 = vsel %vm667, 1, 0
            %v684 = vcvt.s32.f32 %v668
            %v685 = vcvt.s32.f32 %v669
            %v686 = vcvt.s32.f32 %v670
            %v687 = vcvt.s32.f32 %v671
            %v688 = vcvt.s32.f32 %v672
            %v689 = vcvt.s32.f32 %v673
            %v690 = vcvt.s32.f32 %v674
            %v691 = vcvt.s32.f32 %v675
            %v692 = vcvt.s32.f32 %v676
            %v693 = vcvt.s32.f32 %v677
            %v694 = vcvt.s32.f32 %v678
            %v695 = vcvt.s32.f32 %v679
            %v696 = vcvt.s32.f32 %v680
            %v697 = vcvt.s32.f32 %v681
            %v698 = vcvt.s32.f32 %v682
            %v699 = vcvt.s32.f32 %v683
            %v700 = vpack.c.bf16 %v685, %v684
            %v701 = vpack.c.bf16 %v687, %v686
            %v702 = vpack.c.bf16 %v689, %v688
            %v703 = vpack.c.bf16 %v691, %v690
            %v704 = vpack.c.bf16 %v693, %v692
            %v705 = vpack.c.bf16 %v695, %v694
            %v706 = vpack.c.bf16 %v697, %v696
            %v707 = vpack.c.bf16 %v699, %v698
            %v708 = vlaneseq
            %v709 = vshrl.u32 %v708, 7
            %v710 = vsub.s32 0, %v709
            %v711 = vrot.slane %v630, %v710
            %vm712 = vcmp.eq.s32.totalorder %v632, %v711
            %vm713 = vcmp.eq.s32.totalorder %v633, %v711
            %vm714 = vcmp.eq.s32.totalorder %v634, %v711
            %vm715 = vcmp.eq.s32.totalorder %v635, %v711
            %vm716 = vcmp.eq.s32.totalorder %v636, %v711
            %vm717 = vcmp.eq.s32.totalorder %v637, %v711
            %vm718 = vcmp.eq.s32.totalorder %v638, %v711
            %vm719 = vcmp.eq.s32.totalorder %v639, %v711
            %vm720 = vcmp.eq.s32.totalorder %v640, %v711
            %vm721 = vcmp.eq.s32.totalorder %v641, %v711
            %vm722 = vcmp.eq.s32.totalorder %v642, %v711
            %vm723 = vcmp.eq.s32.totalorder %v643, %v711
            %vm724 = vcmp.eq.s32.totalorder %v644, %v711
            %vm725 = vcmp.eq.s32.totalorder %v645, %v711
            %vm726 = vcmp.eq.s32.totalorder %v646, %v711
            %vm727 = vcmp.eq.s32.totalorder %v647, %v711
            %v728 = vsel %vm712, 1, 0
            %v729 = vsel %vm713, 1, 0
            %v730 = vsel %vm714, 1, 0
            %v731 = vsel %vm715, 1, 0
            %v732 = vsel %vm716, 1, 0
            %v733 = vsel %vm717, 1, 0
            %v734 = vsel %vm718, 1, 0
            %v735 = vsel %vm719, 1, 0
            %v736 = vsel %vm720, 1, 0
            %v737 = vsel %vm721, 1, 0
            %v738 = vsel %vm722, 1, 0
            %v739 = vsel %vm723, 1, 0
            %v740 = vsel %vm724, 1, 0
            %v741 = vsel %vm725, 1, 0
            %v742 = vsel %vm726, 1, 0
            %v743 = vsel %vm727, 1, 0
            %v744 = vcvt.s32.f32 %v728
            %v745 = vcvt.s32.f32 %v729
            %v746 = vcvt.s32.f32 %v730
            %v747 = vcvt.s32.f32 %v731
            %v748 = vcvt.s32.f32 %v732
            %v749 = vcvt.s32.f32 %v733
            %v750 = vcvt.s32.f32 %v734
            %v751 = vcvt.s32.f32 %v735
            %v752 = vcvt.s32.f32 %v736
            %v753 = vcvt.s32.f32 %v737
            %v754 = vcvt.s32.f32 %v738
            %v755 = vcvt.s32.f32 %v739
            %v756 = vcvt.s32.f32 %v740
            %v757 = vcvt.s32.f32 %v741
            %v758 = vcvt.s32.f32 %v742
            %v759 = vcvt.s32.f32 %v743
            %v760 = vpack.c.bf16 %v745, %v744
            %v761 = vpack.c.bf16 %v747, %v746
            %v762 = vpack.c.bf16 %v749, %v748
            %v763 = vpack.c.bf16 %v751, %v750
            %v764 = vpack.c.bf16 %v753, %v752
            %v765 = vpack.c.bf16 %v755, %v754
            %v766 = vpack.c.bf16 %v757, %v756
            %v767 = vpack.c.bf16 %v759, %v758
            %768 = vmatprep.subr.bf16.mxu0 0
            %769 = vmatpush1.bf16.msra.mxu0 %v700
            %770 = vmatprep.subr.bf16.mxu0 0
            %771 = vmatpush1.bf16.msra.mxu0 %v701
            %772 = vmatprep.subr.bf16.mxu0 0
            %773 = vmatpush1.bf16.msra.mxu0 %v702
            %774 = vmatprep.subr.bf16.mxu0 0
            %775 = vmatpush1.bf16.msra.mxu0 %v703
            %776 = vmatprep.subr.bf16.mxu0 0
            %777 = vmatpush1.bf16.msra.mxu0 %v704
            %778 = vmatprep.subr.bf16.mxu0 0
            %779 = vmatpush1.bf16.msra.mxu0 %v705
            %780 = vmatprep.subr.bf16.mxu0 0
            %781 = vmatpush1.bf16.msra.mxu0 %v706
            %782 = vmatprep.subr.bf16.mxu0 0
            %783 = vmatpush1.bf16.msra.mxu0 %v707
            %784 = vmatprep.subr.bf16.mxu0 0
            %785 = vmatpush1.bf16.msra.mxu0 0
            %786 = vmatprep.subr.bf16.mxu0 0
            %787 = vmatpush1.bf16.msra.mxu0 0
            %788 = vmatprep.subr.bf16.mxu0 0
            %789 = vmatpush1.bf16.msra.mxu0 0
            %790 = vmatprep.subr.bf16.mxu0 0
            %791 = vmatpush1.bf16.msra.mxu0 0
            %792 = vmatprep.subr.bf16.mxu0 0
            %793 = vmatpush1.bf16.msra.mxu0 0
            %794 = vmatprep.subr.bf16.mxu0 0
            %795 = vmatpush1.bf16.msra.mxu0 0
            %796 = vmatprep.subr.bf16.mxu0 0
            %797 = vmatpush1.bf16.msra.mxu0 0
            %798 = vmatprep.subr.bf16.mxu0 0
            %799 = vmatpush1.bf16.msra.mxu0 0
            %800 = vmatprep.mubr.bf16.mxu0 0
            %801 = vmatmul.mubr.bf16.gmra.mrb[0].mxu0 %v602
            %v802 = vpop.f32.mrb[0].mxu0
            %v803 = vadd.f32 0.0, %v802
            %v804 = vpop.f32.mrb[0].mxu0
            %v805 = vpop.f32.mrb[0].mxu0
            %v806 = vpop.f32.mrb[0].mxu0
            %807 = vdwg.mxu0
            %808 = vmatprep.subr.bf16.mxu0 0
            %809 = vmatpush1.bf16.msra.mxu0 %v760
            %810 = vmatprep.subr.bf16.mxu0 0
            %811 = vmatpush1.bf16.msra.mxu0 %v761
            %812 = vmatprep.subr.bf16.mxu0 0
            %813 = vmatpush1.bf16.msra.mxu0 %v762
            %814 = vmatprep.subr.bf16.mxu0 0
            %815 = vmatpush1.bf16.msra.mxu0 %v763
            %816 = vmatprep.subr.bf16.mxu0 0
            %817 = vmatpush1.bf16.msra.mxu0 %v764
            %818 = vmatprep.subr.bf16.mxu0 0
            %819 = vmatpush1.bf16.msra.mxu0 %v765
            %820 = vmatprep.subr.bf16.mxu0 0
            %821 = vmatpush1.bf16.msra.mxu0 %v766
            %822 = vmatprep.subr.bf16.mxu0 0
            %823 = vmatpush1.bf16.msra.mxu0 %v767
            %824 = vmatprep.subr.bf16.mxu0 0
            %825 = vmatpush1.bf16.msra.mxu0 0
            %826 = vmatprep.subr.bf16.mxu0 0
            %827 = vmatpush1.bf16.msra.mxu0 0
            %828 = vmatprep.subr.bf16.mxu0 0
            %829 = vmatpush1.bf16.msra.mxu0 0
            %830 = vmatprep.subr.bf16.mxu0 0
            %831 = vmatpush1.bf16.msra.mxu0 0
            %832 = vmatprep.subr.bf16.mxu0 0
            %833 = vmatpush1.bf16.msra.mxu0 0
            %834 = vmatprep.subr.bf16.mxu0 0
            %835 = vmatpush1.bf16.msra.mxu0 0
            %836 = vmatprep.subr.bf16.mxu0 0
            %837 = vmatpush1.bf16.msra.mxu0 0
            %838 = vmatprep.subr.bf16.mxu0 0
            %839 = vmatpush1.bf16.msra.mxu0 0
            %840 = vmatprep.mubr.bf16.mxu0 0
            %841 = vmatmul.mubr.bf16.gmra.mrb[0].mxu0 %v602
            %v842 = vpop.f32.mrb[0].mxu0
            %v843 = vadd.f32 0.0, %v842
            %v844 = vpop.f32.mrb[0].mxu0
            %v845 = vpop.f32.mrb[0].mxu0
            %v846 = vpop.f32.mrb[0].mxu0
            %847 = vdwg.mxu0
            %v848 = vmul.f32 %v803, %v843
            %v849 = vrot.slane %v848, 4
            %v850 = vadd.f32 %v848, %v849
            %v851 = vrot.slane %v850, 2
            %v852 = vadd.f32 %v850, %v851
            %v853 = vrot.slane %v852, 1
            %v854 = vadd.f32 %v852, %v853
            %v855 = vadd.f32 %v854, 1.0
            %v856 = vmul.f32 %v855, 2.0
            %vm857 = vcmp.ge.s32.totalorder %v629, 0
            %v858 = vsel %vm857, 1, 0
            %v859 = vcvt.s32.f32 %v858
            %v860 = vld [vmem:[#allocation5] sm:$0x3]
            %v862 = vlaneseq
            %v863 = vshrl.u32 %v862, 7
            %v864 = vsub.s32 0, %v863
            %v865 = vrot.slane %v860, %v864
            %v866 = vlaneseq
            %v867 = vshrl.u32 %v866, 7
            %v868 = vsub.s32 1, %v867
            %v869 = vrot.slane %v860, %v868
            %v872 = vsel %vm605, %v865, 0.0
            %v873 = vsel %vm605, %v869, 0.0
            %v874 = vadd.f32 %v872, %v873
            %875 = vadd.xlane.f32.xlu0 %v874
            %v876 = vpop.xlane.xlu0 %875
            %v877 = vrot.slane %v876, 4
            %v878 = vadd.f32 %v876, %v877
            %v879 = vrot.slane %v878, 2
            %v880 = vadd.f32 %v878, %v879
            %v881 = vrot.slane %v880, 1
            %v882 = vadd.f32 %v880, %v881
            %s883 = vtos %v882
            %v884 = vmul.f32 %v856, 1.442695
            %v885 = vpow.pop %v884
            %v886 = vmul.f32 %v885, %v859
            %v887 = vsel %vm605, %v886, 0.0
            %888 = vadd.xlane.f32.xlu0 %v887
            %v889 = vpop.xlane.xlu0 %888
            %v890 = vrot.slane %v889, 4
            %v891 = vadd.f32 %v889, %v890
            %v892 = vrot.slane %v891, 2
            %v893 = vadd.f32 %v891, %v892
            %v894 = vrot.slane %v893, 1
            %v895 = vadd.f32 %v893, %v894
            %s896 = vtos %v895
            %s897 = sadd.f32 %s883, %s896
            %v898 = vstv %s897
            %v899 = vlog2.pop %v898
            %v900 = vmul.f32 %v899, 0.6931472
            %s901 = vtos %v900
            %v902 = vrcp.pop 256.0
            %s903 = vtos %v902
            %s904 = smul.f32 %s628, %s903
            %s905 = ssub.f32 %s901, %s904
            %s906 = scalar_lea.smem [#allocation11], 0
            %907 = sst [smem:[%s906]] %s905
          $region60: #{tpu_custom_call.1} parent=55 // pred_fallthru
            _
        $region56: #{tpu_custom_call.1} parent=31 // pred_fallthru
          _
        // Predicated region
        $region61: #{tpu_custom_call.1} parent=31 // pred_check
          %p908 = pneg %p115
        $region62: #{tpu_custom_call.1} parent=31 // pred_check_branch
          %910 = sbr.rel (%p908) target = $region64
        $region63: #{tpu_custom_call.1} parent=31 // pred_region
          %s912 = ssub.s32 16, 16
          %913 = vsyncadd [#allocation8], %s912
          %916 = dma.smem_to_hbm [#allocation11], 16, %s3, [#allocation8]
        $region64: #{tpu_custom_call.1} parent=31 // pred_fallthru
          _
        // Predicated region
        $region65: #{tpu_custom_call.1} parent=31 // pred_check
          %p917 = pneg %p115
        $region66: #{tpu_custom_call.1} parent=31 // pred_check_branch
          %919 = sbr.rel (%p917) target = $region68
        $region67: #{tpu_custom_call.1} parent=31 // pred_region
          %920 = dma.done [#allocation8], 16
        $region68: #{tpu_custom_call.1} parent=31 // pred_fallthru
          _
        %921 = sfence
      $region32: #{tpu_custom_call.1} parent=5 // pred_fallthru
        _
      %p922 = scmp.le.s32.totalorder 2, %s12
      // Predicated region
      $region69: #{tpu_custom_call.1} parent=5 // pred_check
        %p923 = pneg %p922
      $region70: #{tpu_custom_call.1} parent=5 // pred_check_branch
        %925 = sbr.rel (%p923) target = $region72
      $region71: #{tpu_custom_call.1} parent=5 // pred_region
        %s926 = ssub.s32 %s12, 2
      $region72: #{tpu_custom_call.1} parent=5 // pred_fallthru
        _
    $region6: #{tpu_custom_call.1} parent=1 // loop_footer
      %s16 = sadd.s32 1, %s12
    $region7: #{tpu_custom_call.1} parent=1 // loop_footer_branch
      %11 = sbr.rel target = $region3
    $region8: #{tpu_custom_call.1} parent=1 // loop_exit
      _
    %927 = vsyncpa [#allocation7], 1
    %s928 = scalar_lea.sflag [#allocation7], 1
    %929 = vsyncpa %s928, 1
    %930 = vsyncpa [#allocation10], 1
    %931 = vsyncpa [#allocation8], 1
    %s932 = scalar_lea.sflag [#allocation8], 1
    %933 = vsyncpa %s932, 1

</llo_original>
